<compile_context>
chip_gen: v7x
topology: tpu7x:2x2x1
jax: 0.10.0
libtpu: 0.0.40
codegen_flags: <defaults>
</compile_context>

<pallas_src>
import functools

import jax
import jax.numpy as jnp
from jax.experimental import pallas as pl
from jax.experimental.pallas import tpu as pltpu


def _stacked_taps(x_ref, *, L):
    """Build the (3*C_in, NB*L) stacked-tap matrix for one (1, C_in, NB, L) block.

    Row index = k*C_in + ci (conv tap k in 0..2), column index = b*L + l.
    The 1-column zero halo of each batch element is created here in VMEM, so no
    padded copy of x is ever materialized in HBM.
    """
    xb = x_ref[0]                                           # (C_in, NB, L)
    C_in, NB, _ = xb.shape
    zero = jnp.zeros((C_in, NB, 1), dtype=xb.dtype)
    xp = jnp.concatenate([zero, xb, zero], axis=2)          # (C_in, NB, L+2)
    taps = jnp.concatenate([xp[:, :, k:k + L] for k in range(3)], axis=0)  # (3*C_in, NB, L)
    return taps.reshape(3 * C_in, NB * L)                   # (3*C_in, NB*L)


def _stats_kernel(w_ref, x_ref, stats_ref, *, L):
    """Pass 1: one stacked matmul per step, emit lane-dense per-block partial stats."""
    xs = _stacked_taps(x_ref, L=L)                                       # (3*C_in, NB*L)
    y = jnp.dot(w_ref[...], xs, preferred_element_type=jnp.float32)      # (C_out, NB*L) f32
    yy = jnp.concatenate([y[None], (y * y)[None]], axis=0)               # (2, C_out, NB*L)
    stats_ref[0] = jnp.sum(yy, axis=-1)                                  # (2, C_out)


def _fwd_kernel(w_ref, shift_ref, x_ref, o_ref, *, L, NB):
    """Pass 2: conv with scale-folded weights, add shift, ReLU, store NCL blocks."""
    xs = _stacked_taps(x_ref, L=L)                                       # (3*C_in, NB*L)
    y = jnp.dot(w_ref[...], xs, preferred_element_type=jnp.float32)      # (C_out, NB*L) f32
    y = jnp.maximum(y + shift_ref[...], 0.0)                             # shift: (C_out, 1)
    for b in range(NB):                                                  # static unroll
        o_ref[b] = y[:, b * L:(b + 1) * L].astype(o_ref.dtype)           # (C_out, L)


def _pick_nb(N, C_in, C_out, L, bytes_x, vmem_limit):
    """Largest NB dividing N whose per-step working set stays within a few MiB."""
    target = min(vmem_limit // 4, 8 * 1024 * 1024)
    # Rough per-batch-element VMEM cost: x block + stacked taps + double buffering (bf16/f32)
    # plus the f32 y / output block and its double buffer.
    per_elem = L * (C_in * bytes_x * 6 + C_out * 4 * 6) + 1
    cap = max(1, min(32, target // per_elem))   # 32 also bounds the store-loop unroll
    nb = 1
    for d in range(1, N + 1):
        if N % d == 0 and d <= cap:
            nb = d
    return nb


@functools.partial(jax.jit, static_argnames=("compute_dtype", "out_dtype"))
def conv_block(x, weight, gamma, beta, *, eps=1e-5,
               compute_dtype=jnp.bfloat16, out_dtype=jnp.float32):
    """x: (N, C_in, L); weight: (C_out, C_in, 3); gamma/beta: (C_out,) -> (N, C_out, L)."""
    N, C_in, L = x.shape
    C_out, _, K = weight.shape
    assert K == 3

    # Generation-aware VMEM budget (v5e/v6e: 128 MiB phys -> ~96 MiB; v7x: 64 MiB -> 48 MiB).
    try:
        vmem_phys = pltpu.get_tpu_info().vmem_capacity_bytes
    except Exception:
        vmem_phys = 64 * 1024 * 1024
    vmem_limit = min(int(vmem_phys * 3 // 4), 112 * 1024 * 1024)

    bytes_x = jnp.dtype(compute_dtype).itemsize
    NB = _pick_nb(N, C_in, C_out, L, bytes_x, vmem_limit)
    n_blocks = N // NB

    # Layout prep (single XLA transpose + cast; no padded HBM copy of x):
    #   x (N, C_in, L) -> (n_blocks, C_in, NB, L) so blocks are full along the last two dims.
    xt = jnp.transpose(x.reshape(n_blocks, NB, C_in, L), (0, 2, 1, 3)).astype(compute_dtype)
    #   weight (C_out, C_in, 3) -> stacked-tap matrix (C_out, 3*C_in), column = k*C_in + ci.
    w2f = jnp.transpose(weight, (0, 2, 1)).reshape(C_out, 3 * C_in).astype(jnp.float32)
    w2 = w2f.astype(compute_dtype)

    cparams = pltpu.CompilerParams(dimension_semantics=("parallel",),
                                   vmem_limit_bytes=vmem_limit)

    # ---- Pass 1: per-block partial sum / sum-of-squares (parallel grid, megacore-friendly) ----
    partials = pl.pallas_call(
        functools.partial(_stats_kernel, L=L),
        grid=(n_blocks,),
        in_specs=[
            pl.BlockSpec((C_out, 3 * C_in), lambda n: (0, 0)),        # stacked weights, resident
            pl.BlockSpec((1, C_in, NB, L), lambda n: (n, 0, 0, 0)),   # NB batch elements / step
        ],
        out_specs=pl.BlockSpec((1, 2, C_out), lambda n: (n, 0, 0)),   # lane-dense partial stats
        out_shape=jax.ShapeDtypeStruct((n_blocks, 2, C_out), jnp.float32),
        compiler_params=cparams,
    )(w2, xt)

    # ---- Fold BN into pass-2 weights / shift (tiny XLA between the two calls) ----
    stats = jnp.sum(partials, axis=0)                                 # (2, C_out) f32
    inv_count = 1.0 / float(N * L)
    mean = stats[0] * inv_count
    var = jnp.maximum(stats[1] * inv_count - mean * mean, 0.0)        # biased var (training fwd)
    scale = gamma.astype(jnp.float32) * jax.lax.rsqrt(var + eps)      # (C_out,)
    shift = (beta.astype(jnp.float32) - mean * scale).reshape(C_out, 1)
    w_fold = (w2f * scale[:, None]).astype(compute_dtype)             # conv + BN-scale in one matmul

    # ---- Pass 2: conv recompute with folded weights, + shift, ReLU, direct NCL writeback ----
    out = pl.pallas_call(
        functools.partial(_fwd_kernel, L=L, NB=NB),
        grid=(n_blocks,),
        in_specs=[
            pl.BlockSpec((C_out, 3 * C_in), lambda n: (0, 0)),        # folded weights, resident
            pl.BlockSpec((C_out, 1), lambda n: (0, 0)),               # BN shift, resident
            pl.BlockSpec((1, C_in, NB, L), lambda n: (n, 0, 0, 0)),   # NB batch elements / step
        ],
        out_specs=pl.BlockSpec((NB, C_out, L), lambda n: (n, 0, 0)),
        out_shape=jax.ShapeDtypeStruct((N, C_out, L), out_dtype),
        compiler_params=cparams,
    )(w_fold, shift, xt)

    return out


def _reference(x, weight, gamma, beta):
    """Pure-JAX f32 reference of the PyTorch forward (training-mode BN)."""
    y = jax.lax.conv_general_dilated(
        x, weight, window_strides=(1,), padding=((1, 1),),
        dimension_numbers=("NCH", "OIH", "NCH"))
    mean = jnp.mean(y, axis=(0, 2), keepdims=True)
    var = jnp.mean((y - mean) ** 2, axis=(0, 2), keepdims=True)
    y = (y - mean) * jax.lax.rsqrt(var + 1e-5)
    y = y * gamma[None, :, None] + beta[None, :, None]
    return jnp.maximum(y, 0.0)


if __name__ == "__main__":
    # Conv1d/BatchNorm1d input layout: (batch, in_ch, length).
    N, C_in, C_out, L = 2, 4, 8, 16

    key = jax.random.PRNGKey(0)
    kx, kw = jax.random.split(key)
    x = jax.random.normal(kx, (N, C_in, L), dtype=jnp.float32)
    weight = jax.random.normal(kw, (C_out, C_in, 3), dtype=jnp.float32) * 0.1  # no bias
    gamma = jnp.ones((C_out,), dtype=jnp.float32)   # BatchNorm1d default affine init
    beta = jnp.zeros((C_out,), dtype=jnp.float32)

    ref = _reference(x, weight, gamma, beta)

    # f32 compute path: tight check of the kernel structure / BN math.
    out_f32 = conv_block(x, weight, gamma, beta, compute_dtype=jnp.float32)
    jax.block_until_ready(out_f32)
    assert out_f32.shape == (N, C_out, L)
    assert jnp.allclose(out_f32, ref, atol=1e-4, rtol=1e-4), "f32 mismatch vs reference"

    # Default bf16 MXU path: looser tolerance for bf16 input/weight rounding only
    # (accumulation and BN statistics stay in f32).
    out = conv_block(x, weight, gamma, beta)
    jax.block_until_ready(out)
    assert out.shape == (N, C_out, L)
    assert jnp.allclose(out, ref, atol=5e-2, rtol=5e-2), "bf16 mismatch vs reference"

    print("KERNEL_OK")
</pallas_src>

<mosaic_0001>
module attributes {stable_mosaic.version = 11 : i64} {
  func.func @_stats_kernel(%arg0: i32, %arg1: memref<8x12xf32, #tpu.memory_space<vmem>>, %arg2: memref<1x4x2x16xf32, #tpu.memory_space<vmem>>, %arg3: memref<1x2x8xf32, #tpu.memory_space<vmem>>) attributes {dimension_semantics = [#tpu.dimension_semantics<parallel>], iteration_bounds = array<i64: 1>, scalar_prefetch = 0 : i64, scratch_operands = 0 : i64, tpu.core_type = #tpu.core_type<tc>, window_params = [{pipeline_mode = #tpu.pipeline_mode<synchronous>, transform_indices = @transform_0, window_bounds = array<i64: 8, 12>}, {transform_indices = @transform_1, window_bounds = array<i64: 1, 4, 2, 16>}, {transform_indices = @transform_2, window_bounds = array<i64: 1, 2, 8>}]} {
    %c0 = arith.constant 0 : index
    %c0_0 = arith.constant 0 : index
    %c0_1 = arith.constant 0 : index
    %c0_2 = arith.constant 0 : index
    %0 = vector.load %arg2[%c0, %c0_0, %c0_1, %c0_2] : memref<1x4x2x16xf32, #tpu.memory_space<vmem>>, vector<1x4x2x16xf32>
    %1 = vector.shape_cast %0 : vector<1x4x2x16xf32> to vector<4x2x16xf32>
    %cst = arith.constant 0.000000e+00 : f32
    %2 = vector.broadcast %cst : f32 to vector<4x2x1xf32>
    %3 = tpu.concatenate %2, %1, %2 in 2 : vector<4x2x1xf32>, vector<4x2x16xf32>, vector<4x2x1xf32> -> vector<4x2x18xf32>
    %4 = vector.extract_strided_slice %3 {offsets = [0, 0, 0], sizes = [4, 2, 16], strides = [1, 1, 1]} : vector<4x2x18xf32> to vector<4x2x16xf32>
    %5 = vector.extract_strided_slice %3 {offsets = [0, 0, 1], sizes = [4, 2, 16], strides = [1, 1, 1]} : vector<4x2x18xf32> to vector<4x2x16xf32>
    %6 = vector.extract_strided_slice %3 {offsets = [0, 0, 2], sizes = [4, 2, 16], strides = [1, 1, 1]} : vector<4x2x18xf32> to vector<4x2x16xf32>
    %7 = tpu.concatenate %4, %5, %6 in 0 : vector<4x2x16xf32>, vector<4x2x16xf32>, vector<4x2x16xf32> -> vector<12x2x16xf32>
    %8 = vector.shape_cast %7 : vector<12x2x16xf32> to vector<12x32xf32>
    %c0_3 = arith.constant 0 : index
    %c0_4 = arith.constant 0 : index
    %9 = vector.load %arg1[%c0_3, %c0_4] : memref<8x12xf32, #tpu.memory_space<vmem>>, vector<8x12xf32>
    %cst_5 = arith.constant dense<0.000000e+00> : vector<8x32xf32>
    %10 = tpu.matmul %9, %8, %cst_5 {dimension_numbers = #tpu.dot_dimension_numbers<[1], [0], [0], [1], [0, 0, 1, 1], [], []>} : vector<8x12xf32>, vector<12x32xf32>, vector<8x32xf32> -> vector<8x32xf32>
    %11 = vector.shape_cast %10 : vector<8x32xf32> to vector<1x8x32xf32>
    %12 = arith.mulf %10, %10 : vector<8x32xf32>
    %13 = vector.shape_cast %12 : vector<8x32xf32> to vector<1x8x32xf32>
    %14 = tpu.concatenate %11, %13 in 0 : vector<1x8x32xf32>, vector<1x8x32xf32> -> vector<2x8x32xf32>
    %cst_6 = arith.constant dense<0.000000e+00> : vector<2x8xf32>
    %15 = vector.multi_reduction <add>, %14, %cst_6 [2] : vector<2x8x32xf32> to vector<2x8xf32>
    %c0_7 = arith.constant 0 : index
    %c0_8 = arith.constant 0 : index
    %c0_9 = arith.constant 0 : index
    %16 = vector.load %arg3[%c0_7, %c0_8, %c0_9] : memref<1x2x8xf32, #tpu.memory_space<vmem>>, vector<1x2x8xf32>
    %17 = vector.shape_cast %16 : vector<1x2x8xf32> to vector<2x8xf32>
    %18 = vector.shape_cast %15 : vector<2x8xf32> to vector<1x2x8xf32>
    tpu.vector_store %arg3[%c0_7, %c0_8, %c0_9], %18 {strides = array<i32>} : memref<1x2x8xf32, #tpu.memory_space<vmem>>, vector<1x2x8xf32>,
    return
  }
  func.func @transform_0(%arg0: i32) -> (i32, i32) {
    %c0_i32 = arith.constant 0 : i32
    %c0_i32_0 = arith.constant 0 : i32
    %c0_i32_1 = arith.constant 0 : i32
    return %c0_i32, %c0_i32_0 : i32, i32
  }
  func.func @transform_1(%arg0: i32) -> (i32, i32, i32, i32) {
    %c0_i32 = arith.constant 0 : i32
    %c0_i32_0 = arith.constant 0 : i32
    %c0_i32_1 = arith.constant 0 : i32
    %c0_i32_2 = arith.constant 0 : i32
    return %arg0, %c0_i32, %c0_i32_0, %c0_i32_1 : i32, i32, i32, i32
  }
  func.func @transform_2(%arg0: i32) -> (i32, i32, i32) {
    %c0_i32 = arith.constant 0 : i32
    %c0_i32_0 = arith.constant 0 : i32
    %c0_i32_1 = arith.constant 0 : i32
    return %arg0, %c0_i32, %c0_i32_0 : i32, i32, i32
  }
}

module attributes {stable_mosaic.version = 11 : i64} {
  func.func @_fwd_kernel(%arg0: i32, %arg1: memref<8x12xf32, #tpu.memory_space<vmem>>, %arg2: memref<8x1xf32, #tpu.memory_space<vmem>>, %arg3: memref<1x4x2x16xf32, #tpu.memory_space<vmem>>, %arg4: memref<2x8x16xf32, #tpu.memory_space<vmem>>) attributes {dimension_semantics = [#tpu.dimension_semantics<parallel>], iteration_bounds = array<i64: 1>, scalar_prefetch = 0 : i64, scratch_operands = 0 : i64, tpu.core_type = #tpu.core_type<tc>, window_params = [{pipeline_mode = #tpu.pipeline_mode<synchronous>, transform_indices = @transform_0, window_bounds = array<i64: 8, 12>}, {pipeline_mode = #tpu.pipeline_mode<synchronous>, transform_indices = @transform_1, window_bounds = array<i64: 8, 1>}, {transform_indices = @transform_2, window_bounds = array<i64: 1, 4, 2, 16>}, {transform_indices = @transform_3, window_bounds = array<i64: 2, 8, 16>}]} {
    %c0 = arith.constant 0 : index
    %c0_0 = arith.constant 0 : index
    %c0_1 = arith.constant 0 : index
    %c0_2 = arith.constant 0 : index
    %0 = vector.load %arg3[%c0, %c0_0, %c0_1, %c0_2] : memref<1x4x2x16xf32, #tpu.memory_space<vmem>>, vector<1x4x2x16xf32>
    %1 = vector.shape_cast %0 : vector<1x4x2x16xf32> to vector<4x2x16xf32>
    %cst = arith.constant 0.000000e+00 : f32
    %2 = vector.broadcast %cst : f32 to vector<4x2x1xf32>
    %3 = tpu.concatenate %2, %1, %2 in 2 : vector<4x2x1xf32>, vector<4x2x16xf32>, vector<4x2x1xf32> -> vector<4x2x18xf32>
    %4 = vector.extract_strided_slice %3 {offsets = [0, 0, 0], sizes = [4, 2, 16], strides = [1, 1, 1]} : vector<4x2x18xf32> to vector<4x2x16xf32>
    %5 = vector.extract_strided_slice %3 {offsets = [0, 0, 1], sizes = [4, 2, 16], strides = [1, 1, 1]} : vector<4x2x18xf32> to vector<4x2x16xf32>
    %6 = vector.extract_strided_slice %3 {offsets = [0, 0, 2], sizes = [4, 2, 16], strides = [1, 1, 1]} : vector<4x2x18xf32> to vector<4x2x16xf32>
    %7 = tpu.concatenate %4, %5, %6 in 0 : vector<4x2x16xf32>, vector<4x2x16xf32>, vector<4x2x16xf32> -> vector<12x2x16xf32>
    %8 = vector.shape_cast %7 : vector<12x2x16xf32> to vector<12x32xf32>
    %c0_3 = arith.constant 0 : index
    %c0_4 = arith.constant 0 : index
    %9 = vector.load %arg1[%c0_3, %c0_4] : memref<8x12xf32, #tpu.memory_space<vmem>>, vector<8x12xf32>
    %cst_5 = arith.constant dense<0.000000e+00> : vector<8x32xf32>
    %10 = tpu.matmul %9, %8, %cst_5 {dimension_numbers = #tpu.dot_dimension_numbers<[1], [0], [0], [1], [0, 0, 1, 1], [], []>} : vector<8x12xf32>, vector<12x32xf32>, vector<8x32xf32> -> vector<8x32xf32>
    %c0_6 = arith.constant 0 : index
    %c0_7 = arith.constant 0 : index
    %11 = vector.load %arg2[%c0_6, %c0_7] : memref<8x1xf32, #tpu.memory_space<vmem>>, vector<8x1xf32>
    %12 = vector.broadcast %11 : vector<8x1xf32> to vector<8x32xf32>
    %13 = arith.addf %10, %12 : vector<8x32xf32>
    %cst_8 = arith.constant 0.000000e+00 : f32
    %14 = vector.broadcast %cst_8 : f32 to vector<8x32xf32>
    %15 = arith.maximumf %13, %14 : vector<8x32xf32>
    %16 = vector.extract_strided_slice %15 {offsets = [0, 0], sizes = [8, 16], strides = [1, 1]} : vector<8x32xf32> to vector<8x16xf32>
    %c0_9 = arith.constant 0 : index
    %c0_10 = arith.constant 0 : index
    %c0_11 = arith.constant 0 : index
    %17 = vector.load %arg4[%c0_9, %c0_10, %c0_11] : memref<2x8x16xf32, #tpu.memory_space<vmem>>, vector<1x8x16xf32>
    %18 = vector.shape_cast %17 : vector<1x8x16xf32> to vector<8x16xf32>
    %19 = vector.shape_cast %16 : vector<8x16xf32> to vector<1x8x16xf32>
    tpu.vector_store %arg4[%c0_9, %c0_10, %c0_11], %19 {strides = array<i32>} : memref<2x8x16xf32, #tpu.memory_space<vmem>>, vector<1x8x16xf32>,
    %20 = vector.extract_strided_slice %15 {offsets = [0, 16], sizes = [8, 16], strides = [1, 1]} : vector<8x32xf32> to vector<8x16xf32>
    %c1 = arith.constant 1 : index
    %c0_12 = arith.constant 0 : index
    %c0_13 = arith.constant 0 : index
    %21 = vector.load %arg4[%c1, %c0_12, %c0_13] : memref<2x8x16xf32, #tpu.memory_space<vmem>>, vector<1x8x16xf32>
    %22 = vector.shape_cast %21 : vector<1x8x16xf32> to vector<8x16xf32>
    %23 = vector.shape_cast %20 : vector<8x16xf32> to vector<1x8x16xf32>
    tpu.vector_store %arg4[%c1, %c0_12, %c0_13], %23 {strides = array<i32>} : memref<2x8x16xf32, #tpu.memory_space<vmem>>, vector<1x8x16xf32>,
    return
  }
  func.func @transform_0(%arg0: i32) -> (i32, i32) {
    %c0_i32 = arith.constant 0 : i32
    %c0_i32_0 = arith.constant 0 : i32
    %c0_i32_1 = arith.constant 0 : i32
    return %c0_i32, %c0_i32_0 : i32, i32
  }
  func.func @transform_1(%arg0: i32) -> (i32, i32) {
    %c0_i32 = arith.constant 0 : i32
    %c0_i32_0 = arith.constant 0 : i32
    %c0_i32_1 = arith.constant 0 : i32
    return %c0_i32, %c0_i32_0 : i32, i32
  }
  func.func @transform_2(%arg0: i32) -> (i32, i32, i32, i32) {
    %c0_i32 = arith.constant 0 : i32
    %c0_i32_0 = arith.constant 0 : i32
    %c0_i32_1 = arith.constant 0 : i32
    %c0_i32_2 = arith.constant 0 : i32
    return %arg0, %c0_i32, %c0_i32_0, %c0_i32_1 : i32, i32, i32, i32
  }
  func.func @transform_3(%arg0: i32) -> (i32, i32, i32) {
    %c0_i32 = arith.constant 0 : i32
    %c0_i32_0 = arith.constant 0 : i32
    %c0_i32_1 = arith.constant 0 : i32
    return %arg0, %c0_i32, %c0_i32_0 : i32, i32, i32
  }
}

</mosaic_0001>

<llo_original>
// kernel: conv_block.3
$region0: #{conv_block.3}
  #allocation0 [shape = 'u32[]', space=smem, size = 0x4, offset = 0x4, fixed_abs, tag = 'smem constant byte address 0x4 - core index']
  #allocation1 [shape = 'u32[144,128]{1,0:T(1,128)}', space=vmem, size = 0x12000, scoped, tag = 'internal scratch']
  %s0 = inlined_call_operand.vmem [shape: f32[8,12], index: 0, kind: input, shape index: {}]
  %s1 = inlined_call_operand.vmem [shape: f32[8,1], index: 1, kind: input, shape index: {}]
  %s2 = inlined_call_operand.vmem [shape: f32[1,4,2,16], index: 2, kind: input, shape index: {}]
  %s3 = inlined_call_operand.hbm [shape: f32[2,8,16], index: 3, kind: output, shape index: {}]
  %s4 = sld [smem:[#allocation0]]
  $region22: #{conv_block.3} parent=0
    _
  %s6 = ssub.s32 1, %s4
  %s7 = scalar_select 0, %s6, %s4
  $region1: #{conv_block.3} parent=0
    #allocation2 [shape = 'u8[8192]{0}', space=vmem, size = 0x2000, scoped, tag = 'output window, operand 0, single buffered']
    #allocation3 [shape = 's32[1]{0}', space=sflag, size = 0x4, scoped, tag = 'scoped memory for conv_block.3']
    %8 = vsyncpa [#allocation3], 0
    // Predicated region
    $region2: #{conv_block.3} parent=1 // pred_check
      _
    $region3: #{conv_block.3} parent=1 // pred_check_branch
      %10 = sbr.rel (0) target = $region5
    $region4: #{conv_block.3} parent=1 // pred_region
      _
    $region5: #{conv_block.3} parent=1 // pred_fallthru
      _
    // Predicated region
    $region6: #{conv_block.3} parent=1 // pred_check
      _
    $region7: #{conv_block.3} parent=1 // pred_check_branch
      %12 = sbr.rel (0) target = $region9
    $region8: #{conv_block.3} parent=1 // pred_region
      _
    $region9: #{conv_block.3} parent=1 // pred_fallthru
      _
    // Predicated region
    $region10: #{conv_block.3} parent=1 // pred_check
      _
    $region11: #{conv_block.3} parent=1 // pred_check_branch
      %14 = sbr.rel (0) target = $region13
    $region12: #{conv_block.3} parent=1 // pred_region
      _
    $region13: #{conv_block.3} parent=1 // pred_fallthru
      _
    %v15 = vld [vmem:[%s2] sm:$0x3]
    %v16 = vld [vmem:[%s2 + $0x2] sm:$0x3]
    %v17 = vld [vmem:[%s2 + $0x4] sm:$0x3]
    %v18 = vld [vmem:[%s2 + $0x6] sm:$0x3]
    %23 = vrot.lane.b32.xlu0 %v15, 1
    %v24 = vpop.permute.xlu0 %23
    %25 = vrot.lane.b32.xlu0 %v16, 1
    %v26 = vpop.permute.xlu0 %25
    %27 = vrot.lane.b32.xlu0 %v17, 1
    %v28 = vpop.permute.xlu0 %27
    %29 = vrot.lane.b32.xlu0 %v18, 1
    %v30 = vpop.permute.xlu0 %29
    %vm35 = vcmask 7168
    %v36 = vsel %vm35, 0.0, %v24
    %v37 = vsel %vm35, 0.0, %v26
    %v38 = vsel %vm35, 0.0, %v28
    %v39 = vsel %vm35, 0.0, %v30
    %vm40 = vcmask 138240
    %v41 = vsel %vm40, %v36, 0.0
    %v42 = vsel %vm40, %v37, 0.0
    %v43 = vsel %vm40, %v38, 0.0
    %v44 = vsel %vm40, %v39, 0.0
    %49 = vrot.lane.b32.xlu0 %v41, 127
    %v50 = vpop.permute.xlu0 %49
    %51 = vrot.lane.b32.xlu0 %v42, 127
    %v52 = vpop.permute.xlu0 %51
    %53 = vrot.lane.b32.xlu0 %v43, 127
    %v54 = vpop.permute.xlu0 %53
    %55 = vrot.lane.b32.xlu0 %v44, 127
    %v56 = vpop.permute.xlu0 %55
    %61 = vrot.lane.b32.xlu0 %v41, 126
    %v62 = vpop.permute.xlu0 %61
    %63 = vrot.lane.b32.xlu0 %v42, 126
    %v64 = vpop.permute.xlu0 %63
    %65 = vrot.lane.b32.xlu0 %v43, 126
    %v66 = vpop.permute.xlu0 %65
    %67 = vrot.lane.b32.xlu0 %v44, 126
    %v68 = vpop.permute.xlu0 %67
    %v73 = vcombine.low %v41, %v43
    %v75 = vunpack.c.l.s4 1983009808
    %v76 = vunpack.c.0.s8 %v75
    %v77 = vlaneseq
    %v78 = vshrl.u32 %v77, 7
    %v79 = vsub.s32 %v76, %v78
    %v80 = vrot.slane %v73, %v79
    %v81 = vcombine.low %v42, %v44
    %v83 = vunpack.c.l.s4 1983009808
    %v84 = vunpack.c.0.s8 %v83
    %v85 = vlaneseq
    %v86 = vshrl.u32 %v85, 7
    %v87 = vsub.s32 %v84, %v86
    %v88 = vrot.slane %v81, %v87
    %v89 = vcombine.low %v50, %v54
    %v91 = vunpack.c.l.s4 1983009808
    %v92 = vunpack.c.0.s8 %v91
    %v93 = vlaneseq
    %v94 = vshrl.u32 %v93, 7
    %v95 = vsub.s32 %v92, %v94
    %v96 = vrot.slane %v89, %v95
    %v97 = vcombine.low %v52, %v56
    %v99 = vunpack.c.l.s4 1983009808
    %v100 = vunpack.c.0.s8 %v99
    %v101 = vlaneseq
    %v102 = vshrl.u32 %v101, 7
    %v103 = vsub.s32 %v100, %v102
    %v104 = vrot.slane %v97, %v103
    %v105 = vcombine.low %v80, %v88
    %v107 = vunpack.c.l.s4 1934713408
    %v108 = vunpack.c.0.s8 %v107
    %v109 = vlaneseq
    %v110 = vshrl.u32 %v109, 7
    %v111 = vsub.s32 %v108, %v110
    %v112 = vrot.slane %v105, %v111
    %v113 = vcombine.low %v96, %v104
    %v115 = vunpack.c.l.s4 1934713408
    %v116 = vunpack.c.0.s8 %v115
    %v117 = vlaneseq
    %v118 = vshrl.u32 %v117, 7
    %v119 = vsub.s32 %v116, %v118
    %v120 = vrot.slane %v113, %v119
    %v121 = vcombine.low %v112, %v120
    %v122 = vcombine.high %v112, %v120
    %v123 = vcombine.low %v62, %v66
    %v125 = vunpack.c.l.s4 1983009808
    %v126 = vunpack.c.0.s8 %v125
    %v127 = vlaneseq
    %v128 = vshrl.u32 %v127, 7
    %v129 = vsub.s32 %v126, %v128
    %v130 = vrot.slane %v123, %v129
    %v131 = vcombine.low %v64, %v68
    %v133 = vunpack.c.l.s4 1983009808
    %v134 = vunpack.c.0.s8 %v133
    %v135 = vlaneseq
    %v136 = vshrl.u32 %v135, 7
    %v137 = vsub.s32 %v134, %v136
    %v138 = vrot.slane %v131, %v137
    %v139 = vcombine.low %v130, %v138
    %v141 = vunpack.c.l.s4 1934713408
    %v142 = vunpack.c.0.s8 %v141
    %v143 = vlaneseq
    %v144 = vshrl.u32 %v143, 7
    %v145 = vsub.s32 %v142, %v144
    %v146 = vrot.slane %v139, %v145
    %v147 = vcombine.high %v146, 0.0
    %150 = vrot.lane.b32.xlu0 %v122, 16
    %v151 = vpop.permute.xlu0 %150
    %152 = vrot.lane.b32.xlu0 %v147, 16
    %v153 = vpop.permute.xlu0 %152
    %vm156 = vcmask 130048
    %v157 = vsel %vm156, %v121, %v151
    %v158 = vsel %vm156, %v146, %v153
    %v159 = vld [vmem:[%s0] sm:$0xff]
    %v160 = vld [vmem:[%s1] sm:$0xff]
    %162 = vset.pattern.permute.xlu0 0
    %163 = vperm.xlu0 %162, %v160
    %v164 = vpop.permute.xlu0 %163
    %vm166 = vcmask 97280
    %v168 = vsel %vm166, %v159, 0
    %vm170 = vcmask 1043456
    %v172 = vsel %vm170, %v158, 0
    %174 = vmatprep.subr.mxu0 0.0
    %175 = vmatpush1.msra.mxu0 %v157
    %176 = vmatprep.subr.mxu0 0.0
    %177 = vmatpush1.msra.mxu0 %v172
    %178 = vmatprep.subr.mxu0 0.0
    %179 = vmatpush1.msra.mxu0 0.0
    %180 = vmatprep.subr.mxu0 0.0
    %181 = vmatpush1.msra.mxu0 0.0
    %182 = vmatprep.subr.mxu0 0.0
    %183 = vmatpush1.msra.mxu0 0.0
    %184 = vmatprep.subr.mxu0 0.0
    %185 = vmatpush1.msra.mxu0 0.0
    %186 = vmatprep.subr.mxu0 0.0
    %187 = vmatpush1.msra.mxu0 0.0
    %188 = vmatprep.subr.mxu0 0.0
    %189 = vmatpush1.msra.mxu0 0.0
    %190 = vmatprep.subr.mxu0 0.0
    %191 = vmatpush1.msra.mxu0 0.0
    %192 = vmatprep.subr.mxu0 0.0
    %193 = vmatpush1.msra.mxu0 0.0
    %194 = vmatprep.subr.mxu0 0.0
    %195 = vmatpush1.msra.mxu0 0.0
    %196 = vmatprep.subr.mxu0 0.0
    %197 = vmatpush1.msra.mxu0 0.0
    %198 = vmatprep.subr.mxu0 0.0
    %199 = vmatpush1.msra.mxu0 0.0
    %200 = vmatprep.subr.mxu0 0.0
    %201 = vmatpush1.msra.mxu0 0.0
    %202 = vmatprep.subr.mxu0 0.0
    %203 = vmatpush1.msra.mxu0 0.0
    %204 = vmatprep.subr.mxu0 0.0
    %205 = vmatpush1.msra.mxu0 0.0
    %206 = vmatprep.subr.mxu0 0.0
    %207 = vmatpush1.msra.mxu0 0.0
    %208 = vmatprep.subr.mxu0 0.0
    %209 = vmatpush1.msra.mxu0 0.0
    %210 = vmatprep.subr.mxu0 0.0
    %211 = vmatpush1.msra.mxu0 0.0
    %212 = vmatprep.subr.mxu0 0.0
    %213 = vmatpush1.msra.mxu0 0.0
    %214 = vmatprep.subr.mxu0 0.0
    %215 = vmatpush1.msra.mxu0 0.0
    %216 = vmatprep.subr.mxu0 0.0
    %217 = vmatpush1.msra.mxu0 0.0
    %218 = vmatprep.subr.mxu0 0.0
    %219 = vmatpush1.msra.mxu0 0.0
    %220 = vmatprep.subr.mxu0 0.0
    %221 = vmatpush1.msra.mxu0 0.0
    %222 = vmatprep.subr.mxu0 0.0
    %223 = vmatpush1.msra.mxu0 0.0
    %224 = vmatprep.subr.mxu0 0.0
    %225 = vmatpush1.msra.mxu0 0.0
    %226 = vmatprep.subr.mxu0 0.0
    %227 = vmatpush1.msra.mxu0 0.0
    %228 = vmatprep.subr.mxu0 0.0
    %229 = vmatpush1.msra.mxu0 0.0
    %230 = vmatprep.subr.mxu0 0.0
    %231 = vmatpush1.msra.mxu0 0.0
    %232 = vmatprep.subr.mxu0 0.0
    %233 = vmatpush1.msra.mxu0 0.0
    %234 = vmatprep.subr.mxu0 0.0
    %235 = vmatpush1.msra.mxu0 0.0
    %236 = vmatprep.subr.mxu0 0.0
    %237 = vmatpush1.msra.mxu0 0.0
    %238 = vmatprep.mubr.f32.mxu0 0.0
    %239 = vmatmul.mubr.f32.gmra.mrb[0].mxu0 %v168
    %v240 = vpop.f32.mrb[0].mxu0
    %v241 = vadd.f32 %v164, %v240
    %v242 = vpop.f32.mrb[0].mxu0
    %243 = vdwg.mxu0
    %v244 = vmax.f32 %v241, 0.0
    %245 = vst.msk [vmem:[#allocation2] sm:$0xff] %vm156, %v244
    %247 = vrot.lane.b32.xlu0 %v244, 112
    %v248 = vpop.permute.xlu0 %247
    %s250 = scalar_lea.vmem [#allocation2], 8
    %251 = vst.msk [vmem:[%s250] sm:$0xff] %vm156, %v248
    // Predicated region
    $region14: #{conv_block.3} parent=1 // pred_check
      _
    $region15: #{conv_block.3} parent=1 // pred_check_branch
      %253 = sbr.rel (0) target = $region17
    $region16: #{conv_block.3} parent=1 // pred_region
      %s255 = ssub.s32 256, 256
      %256 = vsyncadd [#allocation3], %s255
      %s257 = sshll.u32 [#allocation2], 4
      %s258 = int_to_ptr.vmem [resolvable:$true] %s257
      %263 = dma.vmem_to_hbm [thread:$0]  %s258, 256, %s3, [#allocation3], 128, 128, 8
    $region17: #{conv_block.3} parent=1 // pred_fallthru
      _
    // Predicated region
    $region18: #{conv_block.3} parent=1 // pred_check
      _
    $region19: #{conv_block.3} parent=1 // pred_check_branch
      %265 = sbr.rel (0) target = $region21
    $region20: #{conv_block.3} parent=1 // pred_region
      %266 = dma.done [#allocation3], 256
    $region21: #{conv_block.3} parent=1 // pred_fallthru
      _
    %267 = vsyncpa [#allocation3], 1

// kernel: conv_block.2
$region0: #{conv_block.2}
  #allocation0 [shape = 'u32[]', space=smem, size = 0x4, offset = 0x4, fixed_abs, tag = 'smem constant byte address 0x4 - core index']
  #allocation1 [shape = 'u32[144,128]{1,0:T(1,128)}', space=vmem, size = 0x12000, scoped, tag = 'internal scratch']
  %s0 = inlined_call_operand.vmem [shape: f32[8,12], index: 0, kind: input, shape index: {}]
  %s1 = inlined_call_operand.vmem [shape: f32[1,4,2,16], index: 1, kind: input, shape index: {}]
  %s2 = inlined_call_operand.vmem [shape: f32[1,2,8], index: 2, kind: output, shape index: {}]
  %s3 = sld [smem:[#allocation0]]
  $region18: #{conv_block.2} parent=0
    _
  %s5 = ssub.s32 1, %s3
  %s6 = scalar_select 0, %s5, %s3
  // Predicated region
  $region2: #{conv_block.2} parent=0 // pred_check
    _
  $region3: #{conv_block.2} parent=0 // pred_check_branch
    %8 = sbr.rel (0) target = $region5
  $region4: #{conv_block.2} parent=0 // pred_region
    _
  $region5: #{conv_block.2} parent=0 // pred_fallthru
    _
  // Predicated region
  $region6: #{conv_block.2} parent=0 // pred_check
    _
  $region7: #{conv_block.2} parent=0 // pred_check_branch
    %10 = sbr.rel (0) target = $region9
  $region8: #{conv_block.2} parent=0 // pred_region
    _
  $region9: #{conv_block.2} parent=0 // pred_fallthru
    _
  %v11 = vld [vmem:[%s1] sm:$0x3]
  %v12 = vld [vmem:[%s1 + $0x2] sm:$0x3]
  %v13 = vld [vmem:[%s1 + $0x4] sm:$0x3]
  %v14 = vld [vmem:[%s1 + $0x6] sm:$0x3]
  %19 = vrot.lane.b32.xlu0 %v11, 1
  %v20 = vpop.permute.xlu0 %19
  %21 = vrot.lane.b32.xlu0 %v12, 1
  %v22 = vpop.permute.xlu0 %21
  %23 = vrot.lane.b32.xlu0 %v13, 1
  %v24 = vpop.permute.xlu0 %23
  %25 = vrot.lane.b32.xlu0 %v14, 1
  %v26 = vpop.permute.xlu0 %25
  %vm31 = vcmask 7168
  %v32 = vsel %vm31, 0.0, %v20
  %v33 = vsel %vm31, 0.0, %v22
  %v34 = vsel %vm31, 0.0, %v24
  %v35 = vsel %vm31, 0.0, %v26
  %vm36 = vcmask 138240
  %v37 = vsel %vm36, %v32, 0.0
  %v38 = vsel %vm36, %v33, 0.0
  %v39 = vsel %vm36, %v34, 0.0
  %v40 = vsel %vm36, %v35, 0.0
  %45 = vrot.lane.b32.xlu0 %v37, 127
  %v46 = vpop.permute.xlu0 %45
  %47 = vrot.lane.b32.xlu0 %v38, 127
  %v48 = vpop.permute.xlu0 %47
  %49 = vrot.lane.b32.xlu0 %v39, 127
  %v50 = vpop.permute.xlu0 %49
  %51 = vrot.lane.b32.xlu0 %v40, 127
  %v52 = vpop.permute.xlu0 %51
  %57 = vrot.lane.b32.xlu0 %v37, 126
  %v58 = vpop.permute.xlu0 %57
  %59 = vrot.lane.b32.xlu0 %v38, 126
  %v60 = vpop.permute.xlu0 %59
  %61 = vrot.lane.b32.xlu0 %v39, 126
  %v62 = vpop.permute.xlu0 %61
  %63 = vrot.lane.b32.xlu0 %v40, 126
  %v64 = vpop.permute.xlu0 %63
  %v69 = vcombine.low %v37, %v39
  %v71 = vunpack.c.l.s4 1983009808
  %v72 = vunpack.c.0.s8 %v71
  %v73 = vlaneseq
  %v74 = vshrl.u32 %v73, 7
  %v75 = vsub.s32 %v72, %v74
  %v76 = vrot.slane %v69, %v75
  %v77 = vcombine.low %v38, %v40
  %v79 = vunpack.c.l.s4 1983009808
  %v80 = vunpack.c.0.s8 %v79
  %v81 = vlaneseq
  %v82 = vshrl.u32 %v81, 7
  %v83 = vsub.s32 %v80, %v82
  %v84 = vrot.slane %v77, %v83
  %v85 = vcombine.low %v46, %v50
  %v87 = vunpack.c.l.s4 1983009808
  %v88 = vunpack.c.0.s8 %v87
  %v89 = vlaneseq
  %v90 = vshrl.u32 %v89, 7
  %v91 = vsub.s32 %v88, %v90
  %v92 = vrot.slane %v85, %v91
  %v93 = vcombine.low %v48, %v52
  %v95 = vunpack.c.l.s4 1983009808
  %v96 = vunpack.c.0.s8 %v95
  %v97 = vlaneseq
  %v98 = vshrl.u32 %v97, 7
  %v99 = vsub.s32 %v96, %v98
  %v100 = vrot.slane %v93, %v99
  %v101 = vcombine.low %v76, %v84
  %v103 = vunpack.c.l.s4 1934713408
  %v104 = vunpack.c.0.s8 %v103
  %v105 = vlaneseq
  %v106 = vshrl.u32 %v105, 7
  %v107 = vsub.s32 %v104, %v106
  %v108 = vrot.slane %v101, %v107
  %v109 = vcombine.low %v92, %v100
  %v111 = vunpack.c.l.s4 1934713408
  %v112 = vunpack.c.0.s8 %v111
  %v113 = vlaneseq
  %v114 = vshrl.u32 %v113, 7
  %v115 = vsub.s32 %v112, %v114
  %v116 = vrot.slane %v109, %v115
  %v117 = vcombine.low %v108, %v116
  %v118 = vcombine.high %v108, %v116
  %v119 = vcombine.low %v58, %v62
  %v121 = vunpack.c.l.s4 1983009808
  %v122 = vunpack.c.0.s8 %v121
  %v123 = vlaneseq
  %v124 = vshrl.u32 %v123, 7
  %v125 = vsub.s32 %v122, %v124
  %v126 = vrot.slane %v119, %v125
  %v127 = vcombine.low %v60, %v64
  %v129 = vunpack.c.l.s4 1983009808
  %v130 = vunpack.c.0.s8 %v129
  %v131 = vlaneseq
  %v132 = vshrl.u32 %v131, 7
  %v133 = vsub.s32 %v130, %v132
  %v134 = vrot.slane %v127, %v133
  %v135 = vcombine.low %v126, %v134
  %v137 = vunpack.c.l.s4 1934713408
  %v138 = vunpack.c.0.s8 %v137
  %v139 = vlaneseq
  %v140 = vshrl.u32 %v139, 7
  %v141 = vsub.s32 %v138, %v140
  %v142 = vrot.slane %v135, %v141
  %v143 = vcombine.high %v142, 0.0
  %146 = vrot.lane.b32.xlu0 %v118, 16
  %v147 = vpop.permute.xlu0 %146
  %148 = vrot.lane.b32.xlu0 %v143, 16
  %v149 = vpop.permute.xlu0 %148
  %vm152 = vcmask 130048
  %v153 = vsel %vm152, %v117, %v147
  %v154 = vsel %vm152, %v142, %v149
  %v155 = vld [vmem:[%s0] sm:$0xff]
  %vm156 = vcmask 97280
  %v158 = vsel %vm156, %v155, 0
  %vm160 = vcmask 1043456
  %v162 = vsel %vm160, %v154, 0
  %164 = vmatprep.subr.mxu0 0.0
  %165 = vmatpush1.msra.mxu0 %v153
  %166 = vmatprep.subr.mxu0 0.0
  %167 = vmatpush1.msra.mxu0 %v162
  %168 = vmatprep.subr.mxu0 0.0
  %169 = vmatpush1.msra.mxu0 0.0
  %170 = vmatprep.subr.mxu0 0.0
  %171 = vmatpush1.msra.mxu0 0.0
  %172 = vmatprep.subr.mxu0 0.0
  %173 = vmatpush1.msra.mxu0 0.0
  %174 = vmatprep.subr.mxu0 0.0
  %175 = vmatpush1.msra.mxu0 0.0
  %176 = vmatprep.subr.mxu0 0.0
  %177 = vmatpush1.msra.mxu0 0.0
  %178 = vmatprep.subr.mxu0 0.0
  %179 = vmatpush1.msra.mxu0 0.0
  %180 = vmatprep.subr.mxu0 0.0
  %181 = vmatpush1.msra.mxu0 0.0
  %182 = vmatprep.subr.mxu0 0.0
  %183 = vmatpush1.msra.mxu0 0.0
  %184 = vmatprep.subr.mxu0 0.0
  %185 = vmatpush1.msra.mxu0 0.0
  %186 = vmatprep.subr.mxu0 0.0
  %187 = vmatpush1.msra.mxu0 0.0
  %188 = vmatprep.subr.mxu0 0.0
  %189 = vmatpush1.msra.mxu0 0.0
  %190 = vmatprep.subr.mxu0 0.0
  %191 = vmatpush1.msra.mxu0 0.0
  %192 = vmatprep.subr.mxu0 0.0
  %193 = vmatpush1.msra.mxu0 0.0
  %194 = vmatprep.subr.mxu0 0.0
  %195 = vmatpush1.msra.mxu0 0.0
  %196 = vmatprep.subr.mxu0 0.0
  %197 = vmatpush1.msra.mxu0 0.0
  %198 = vmatprep.subr.mxu0 0.0
  %199 = vmatpush1.msra.mxu0 0.0
  %200 = vmatprep.subr.mxu0 0.0
  %201 = vmatpush1.msra.mxu0 0.0
  %202 = vmatprep.subr.mxu0 0.0
  %203 = vmatpush1.msra.mxu0 0.0
  %204 = vmatprep.subr.mxu0 0.0
  %205 = vmatpush1.msra.mxu0 0.0
  %206 = vmatprep.subr.mxu0 0.0
  %207 = vmatpush1.msra.mxu0 0.0
  %208 = vmatprep.subr.mxu0 0.0
  %209 = vmatpush1.msra.mxu0 0.0
  %210 = vmatprep.subr.mxu0 0.0
  %211 = vmatpush1.msra.mxu0 0.0
  %212 = vmatprep.subr.mxu0 0.0
  %213 = vmatpush1.msra.mxu0 0.0
  %214 = vmatprep.subr.mxu0 0.0
  %215 = vmatpush1.msra.mxu0 0.0
  %216 = vmatprep.subr.mxu0 0.0
  %217 = vmatpush1.msra.mxu0 0.0
  %218 = vmatprep.subr.mxu0 0.0
  %219 = vmatpush1.msra.mxu0 0.0
  %220 = vmatprep.subr.mxu0 0.0
  %221 = vmatpush1.msra.mxu0 0.0
  %222 = vmatprep.subr.mxu0 0.0
  %223 = vmatpush1.msra.mxu0 0.0
  %224 = vmatprep.subr.mxu0 0.0
  %225 = vmatpush1.msra.mxu0 0.0
  %226 = vmatprep.subr.mxu0 0.0
  %227 = vmatpush1.msra.mxu0 0.0
  %228 = vmatprep.mubr.f32.mxu0 0.0
  %229 = vmatmul.mubr.f32.gmra.mrb[0].mxu0 %v158
  %v230 = vpop.f32.mrb[0].mxu0
  %v231 = vadd.f32 0.0, %v230
  %v232 = vpop.f32.mrb[0].mxu0
  %233 = vdwg.mxu0
  %v234 = vmul.f32 %v231, %v231
  %vm235 = vcmask 261120
  %v236 = vsel %vm235, %v231, 0.0
  %237 = vadd.xlane.f32.xlu0 %v236
  %v238 = vpop.xlane.xlu0 %237
  %v239 = vsel %vm235, %v234, 0.0
  %240 = vadd.xlane.f32.xlu0 %v239
  %v241 = vpop.xlane.xlu0 %240
  %v244 = vlaneseq
  %v245 = vand.u32 %v244, 127
  %v246 = vlaneseq
  %v247 = vshrl.u32 %v246, 7
  %v248 = vsub.s32 %v245, %v247
  %v249 = vrot.slane %v238, %v248
  %v250 = vlaneseq
  %v251 = vshrl.u32 %v250, 7
  %v252 = vsub.s32 %v245, %v251
  %v253 = vrot.slane %v241, %v252
  %vm254 = vcmask 1041409
  %v255 = vsel %vm254, %v253, %v249
  %vm257 = vcmask 58368
  %258 = vst.msk [vmem:[%s2] sm:$0x3] %vm257, %v255
  // Predicated region
  $region10: #{conv_block.2} parent=0 // pred_check
    _
  $region11: #{conv_block.2} parent=0 // pred_check_branch
    %260 = sbr.rel (0) target = $region13
  $region12: #{conv_block.2} parent=0 // pred_region
    _
  $region13: #{conv_block.2} parent=0 // pred_fallthru
    _
  // Predicated region
  $region14: #{conv_block.2} parent=0 // pred_check
    _
  $region15: #{conv_block.2} parent=0 // pred_check_branch
    %262 = sbr.rel (0) target = $region17
  $region16: #{conv_block.2} parent=0 // pred_region
    _
  $region17: #{conv_block.2} parent=0 // pred_fallthru
    _

</llo_original>
